<compile_context>
chip_gen: v5e
topology: v5e:2x2
jax: 0.10.0
libtpu: 0.0.40
codegen_flags: <defaults>
</compile_context>

<pallas_src>
import functools

import jax
import jax.numpy as jnp
import numpy as np
from jax.experimental import pallas as pl
from jax.experimental.pallas import tpu as pltpu
from jax.scipy.special import erf as _jax_erf


_SQRT1_2 = 0.7071067811865476


def _gelu_erf(x):
    """Exact erf-based gelu; erf via A&S 7.1.26 polynomial (|err| <= 1.5e-7)."""
    z = x * _SQRT1_2
    az = jnp.abs(z)
    t = 1.0 / (1.0 + 0.3275911 * az)
    poly = ((((1.061405429 * t - 1.453152027) * t + 1.421413741) * t
             - 0.284496736) * t + 0.254829592) * t
    erf_abs = 1.0 - poly * jnp.exp(-az * az)
    erf_z = jnp.where(z < 0.0, -erf_abs, erf_abs)
    return x * 0.5 * (1.0 + erf_z)


def _ffn_ln_kernel(x_ref, w1_ref, b1_ref, w2_ref, b2_ref, g_ref, beta_ref,
                   out_ref, *, ln_eps):
    x = x_ref[...]                                            # [tm, H] f32
    # dense_1 (+bias) : bf16 MXU inputs, f32 accumulation
    h = jnp.dot(x.astype(jnp.bfloat16), w1_ref[...],
                preferred_element_type=jnp.float32) + b1_ref[...]   # [tm, 4H]
    h = _gelu_erf(h)
    # dense_2 (+bias)
    h2 = jnp.dot(h.astype(jnp.bfloat16), w2_ref[...],
                 preferred_element_type=jnp.float32) + b2_ref[...]  # [tm, H]
    # dropout = identity (eval mode); residual + TF-style LayerNorm (eps in sqrt)
    res = h2 + x
    u = jnp.mean(res, axis=-1, keepdims=True)
    c = res - u
    var = jnp.mean(c * c, axis=-1, keepdims=True)
    out_ref[...] = g_ref[...] * (c * jax.lax.rsqrt(var + ln_eps)) + beta_ref[...]


def _fused_ffn_layernorm(x2d, w1, b1, w2, b2, gamma, beta, *, ln_eps=1e-12):
    """Row-wise LayerNorm(gelu(x @ W1 + b1) @ W2 + b2 + x).  x2d: [N, H] f32."""
    N, H = x2d.shape
    H4 = w1.shape[1]
    tm = N if N <= 512 else 512            # row tile (full-N block at small sizes)
    grid = (pl.cdiv(N, tm),)

    w1b = w1.astype(jnp.bfloat16)          # cast weights once, halves DMA bytes
    w2b = w2.astype(jnp.bfloat16)
    b1r = b1.reshape(1, H4).astype(jnp.float32)
    b2r = b2.reshape(1, H).astype(jnp.float32)
    gr = gamma.reshape(1, H).astype(jnp.float32)
    br = beta.reshape(1, H).astype(jnp.float32)

    kernel = functools.partial(_ffn_ln_kernel, ln_eps=ln_eps)

    grid_spec = pltpu.PrefetchScalarGridSpec(
        num_scalar_prefetch=0,
        grid=grid,
        in_specs=[
            pl.BlockSpec((tm, H), lambda i: (i, 0)),    # x rows
            pl.BlockSpec((H, H4), lambda i: (0, 0)),    # W1 (in,out) bf16
            pl.BlockSpec((1, H4), lambda i: (0, 0)),    # b1
            pl.BlockSpec((H4, H), lambda i: (0, 0)),    # W2 (in,out) bf16
            pl.BlockSpec((1, H), lambda i: (0, 0)),     # b2
            pl.BlockSpec((1, H), lambda i: (0, 0)),     # LN gamma
            pl.BlockSpec((1, H), lambda i: (0, 0)),     # LN beta
        ],
        out_specs=pl.BlockSpec((tm, H), lambda i: (i, 0)),
    )

    return pl.pallas_call(
        kernel,
        grid_spec=grid_spec,
        out_shape=jax.ShapeDtypeStruct((N, H), jnp.float32),
        compiler_params=pltpu.CompilerParams(
            dimension_semantics=("parallel",),
            vmem_limit_bytes=48 * 1024 * 1024,
        ),
    )(x2d, w1b, b1r, w2b, b2r, gr, br)


@jax.jit
def dpp_intermediate(input_tensor, user_emb,
                     w1, b1, w2, b2, ln_g, ln_b,
                     wu1, bu1, wu2, bu2, lnu_g, lnu_b):
    """Forward of DPPIntermediate. Returns (hidden_states, hidden_user)."""
    B, S, H = input_tensor.shape
    x2d = input_tensor.reshape(B * S, H)
    hidden = _fused_ffn_layernorm(x2d, w1, b1, w2, b2, ln_g, ln_b).reshape(B, S, H)
    hidden_user = _fused_ffn_layernorm(user_emb, wu1, bu1, wu2, bu2, lnu_g, lnu_b)
    return hidden, hidden_user


def _reference(x, user, w1, b1, w2, b2, g, be, wu1, bu1, wu2, bu2, gu, beu):
    """Pure-JAX f32 replica of the PyTorch forward (exact erf gelu)."""
    def gelu(v):
        return v * 0.5 * (1.0 + _jax_erf(v * _SQRT1_2))

    def ffn_ln(v, W1, B1, W2, B2, G, Be):
        h = gelu(v @ W1 + B1) @ W2 + B2
        r = h + v                                  # dropout = identity (eval)
        u = jnp.mean(r, -1, keepdims=True)
        s = jnp.mean((r - u) ** 2, -1, keepdims=True)
        return G * (r - u) / jnp.sqrt(s + 1e-12) + Be

    return (ffn_ln(x, w1, b1, w2, b2, g, be),
            ffn_ln(user, wu1, bu1, wu2, bu2, gu, beu))


if __name__ == "__main__":
    B, S, H = 2, 8, 32
    H4 = 4 * H

    key = jax.random.PRNGKey(0)
    ks = jax.random.split(key, 10)

    x = jax.random.normal(ks[0], (B, S, H), dtype=jnp.float32)
    user = jax.random.normal(ks[1], (B, H), dtype=jnp.float32)

    # Linear weights stored [in, out] (== torch weight.T), deterministic init.
    w1 = 0.1 * jax.random.normal(ks[2], (H, H4), dtype=jnp.float32)
    b1 = 0.1 * jax.random.normal(ks[3], (H4,), dtype=jnp.float32)
    w2 = 0.1 * jax.random.normal(ks[4], (H4, H), dtype=jnp.float32)
    b2 = 0.1 * jax.random.normal(ks[5], (H,), dtype=jnp.float32)
    wu1 = 0.1 * jax.random.normal(ks[6], (H, H4), dtype=jnp.float32)
    bu1 = 0.1 * jax.random.normal(ks[7], (H4,), dtype=jnp.float32)
    wu2 = 0.1 * jax.random.normal(ks[8], (H4, H), dtype=jnp.float32)
    bu2 = 0.1 * jax.random.normal(ks[9], (H,), dtype=jnp.float32)
    ln_g = jnp.ones((H,), dtype=jnp.float32)
    ln_b = jnp.zeros((H,), dtype=jnp.float32)
    lnu_g = jnp.ones((H,), dtype=jnp.float32)
    lnu_b = jnp.zeros((H,), dtype=jnp.float32)

    hidden, hidden_user = dpp_intermediate(x, user, w1, b1, w2, b2, ln_g, ln_b,
                                           wu1, bu1, wu2, bu2, lnu_g, lnu_b)
    jax.block_until_ready((hidden, hidden_user))

    ref_h, ref_u = _reference(x, user, w1, b1, w2, b2, ln_g, ln_b,
                              wu1, bu1, wu2, bu2, lnu_g, lnu_b)
    # Tolerance covers the intentional bf16 MXU inputs (f32 accumulation).
    np.testing.assert_allclose(np.asarray(hidden), np.asarray(ref_h),
                               rtol=2e-2, atol=2e-2)
    np.testing.assert_allclose(np.asarray(hidden_user), np.asarray(ref_u),
                               rtol=2e-2, atol=2e-2)

    print("KERNEL_OK")
</pallas_src>

<mosaic_0001>
module attributes {stable_mosaic.version = 11 : i64} {
  func.func @_ffn_ln_kernel(%arg0: i32, %arg1: memref<16x32xf32, #tpu.memory_space<vmem>>, %arg2: memref<32x128xbf16, #tpu.memory_space<vmem>>, %arg3: memref<1x128xf32, #tpu.memory_space<vmem>>, %arg4: memref<128x32xbf16, #tpu.memory_space<vmem>>, %arg5: memref<1x32xf32, #tpu.memory_space<vmem>>, %arg6: memref<1x32xf32, #tpu.memory_space<vmem>>, %arg7: memref<1x32xf32, #tpu.memory_space<vmem>>, %arg8: memref<16x32xf32, #tpu.memory_space<vmem>>) attributes {dimension_semantics = [#tpu.dimension_semantics<parallel>], iteration_bounds = array<i64: 1>, scalar_prefetch = 0 : i64, scratch_operands = 0 : i64, tpu.core_type = #tpu.core_type<tc>, window_params = [{transform_indices = @transform_0, window_bounds = array<i64: 16, 32>}, {pipeline_mode = #tpu.pipeline_mode<synchronous>, transform_indices = @transform_1, window_bounds = array<i64: 32, 128>}, {pipeline_mode = #tpu.pipeline_mode<synchronous>, transform_indices = @transform_2, window_bounds = array<i64: 1, 128>}, {pipeline_mode = #tpu.pipeline_mode<synchronous>, transform_indices = @transform_3, window_bounds = array<i64: 128, 32>}, {pipeline_mode = #tpu.pipeline_mode<synchronous>, transform_indices = @transform_4, window_bounds = array<i64: 1, 32>}, {pipeline_mode = #tpu.pipeline_mode<synchronous>, transform_indices = @transform_5, window_bounds = array<i64: 1, 32>}, {pipeline_mode = #tpu.pipeline_mode<synchronous>, transform_indices = @transform_6, window_bounds = array<i64: 1, 32>}, {transform_indices = @transform_7, window_bounds = array<i64: 16, 32>}]} {
    %c0 = arith.constant 0 : index
    %c0_0 = arith.constant 0 : index
    %0 = vector.load %arg1[%c0, %c0_0] : memref<16x32xf32, #tpu.memory_space<vmem>>, vector<16x32xf32>
    %1 = arith.truncf %0 : vector<16x32xf32> to vector<16x32xbf16>
    %c0_1 = arith.constant 0 : index
    %c0_2 = arith.constant 0 : index
    %2 = vector.load %arg2[%c0_1, %c0_2] : memref<32x128xbf16, #tpu.memory_space<vmem>>, vector<32x128xbf16>
    %cst = arith.constant dense<0.000000e+00> : vector<16x128xf32>
    %3 = tpu.matmul %1, %2, %cst {dimension_numbers = #tpu.dot_dimension_numbers<[1], [0], [0], [1], [0, 0, 1, 1], [], []>} : vector<16x32xbf16>, vector<32x128xbf16>, vector<16x128xf32> -> vector<16x128xf32>
    %c0_3 = arith.constant 0 : index
    %c0_4 = arith.constant 0 : index
    %4 = vector.load %arg3[%c0_3, %c0_4] : memref<1x128xf32, #tpu.memory_space<vmem>>, vector<1x128xf32>
    %5 = vector.broadcast %4 : vector<1x128xf32> to vector<16x128xf32>
    %6 = arith.addf %3, %5 : vector<16x128xf32>
    %cst_5 = arith.constant 0.707106769 : f32
    %7 = vector.broadcast %cst_5 : f32 to vector<16x128xf32>
    %8 = arith.mulf %6, %7 : vector<16x128xf32>
    %9 = math.absf %8 : vector<16x128xf32>
    %cst_6 = arith.constant 0.327591091 : f32
    %10 = vector.broadcast %cst_6 : f32 to vector<16x128xf32>
    %11 = arith.mulf %10, %9 : vector<16x128xf32>
    %cst_7 = arith.constant 1.000000e+00 : f32
    %12 = vector.broadcast %cst_7 : f32 to vector<16x128xf32>
    %13 = arith.addf %12, %11 : vector<16x128xf32>
    %cst_8 = arith.constant 1.000000e+00 : f32
    %14 = vector.broadcast %cst_8 : f32 to vector<16x128xf32>
    %15 = arith.divf %14, %13 : vector<16x128xf32>
    %cst_9 = arith.constant 1.06140542 : f32
    %16 = vector.broadcast %cst_9 : f32 to vector<16x128xf32>
    %17 = arith.mulf %16, %15 : vector<16x128xf32>
    %cst_10 = arith.constant 1.45315206 : f32
    %18 = vector.broadcast %cst_10 : f32 to vector<16x128xf32>
    %19 = arith.subf %17, %18 : vector<16x128xf32>
    %20 = arith.mulf %19, %15 : vector<16x128xf32>
    %cst_11 = arith.constant 1.42141378 : f32
    %21 = vector.broadcast %cst_11 : f32 to vector<16x128xf32>
    %22 = arith.addf %20, %21 : vector<16x128xf32>
    %23 = arith.mulf %22, %15 : vector<16x128xf32>
    %cst_12 = arith.constant 0.284496725 : f32
    %24 = vector.broadcast %cst_12 : f32 to vector<16x128xf32>
    %25 = arith.subf %23, %24 : vector<16x128xf32>
    %26 = arith.mulf %25, %15 : vector<16x128xf32>
    %cst_13 = arith.constant 0.254829586 : f32
    %27 = vector.broadcast %cst_13 : f32 to vector<16x128xf32>
    %28 = arith.addf %26, %27 : vector<16x128xf32>
    %29 = arith.mulf %28, %15 : vector<16x128xf32>
    %cst_14 = arith.constant 0.000000e+00 : f32
    %30 = vector.broadcast %cst_14 : f32 to vector<16x128xf32>
    %31 = arith.subf %30, %9 : vector<16x128xf32>
    %32 = arith.mulf %31, %9 : vector<16x128xf32>
    %33 = math.exp %32 : vector<16x128xf32>
    %34 = arith.mulf %29, %33 : vector<16x128xf32>
    %cst_15 = arith.constant 1.000000e+00 : f32
    %35 = vector.broadcast %cst_15 : f32 to vector<16x128xf32>
    %36 = arith.subf %35, %34 : vector<16x128xf32>
    %cst_16 = arith.constant 0.000000e+00 : f32
    %37 = vector.broadcast %cst_16 : f32 to vector<16x128xf32>
    %38 = arith.cmpf olt, %8, %37 : vector<16x128xf32>
    %cst_17 = arith.constant 0.000000e+00 : f32
    %39 = vector.broadcast %cst_17 : f32 to vector<16x128xf32>
    %40 = arith.subf %39, %36 : vector<16x128xf32>
    %41 = arith.select %38, %40, %36 : vector<16x128xi1>, vector<16x128xf32>
    %cst_18 = arith.constant 5.000000e-01 : f32
    %42 = vector.broadcast %cst_18 : f32 to vector<16x128xf32>
    %43 = arith.mulf %6, %42 : vector<16x128xf32>
    %cst_19 = arith.constant 1.000000e+00 : f32
    %44 = vector.broadcast %cst_19 : f32 to vector<16x128xf32>
    %45 = arith.addf %44, %41 : vector<16x128xf32>
    %46 = arith.mulf %43, %45 : vector<16x128xf32>
    %47 = arith.truncf %46 : vector<16x128xf32> to vector<16x128xbf16>
    %c0_20 = arith.constant 0 : index
    %c0_21 = arith.constant 0 : index
    %48 = vector.load %arg4[%c0_20, %c0_21] : memref<128x32xbf16, #tpu.memory_space<vmem>>, vector<128x32xbf16>
    %cst_22 = arith.constant dense<0.000000e+00> : vector<16x32xf32>
    %49 = tpu.matmul %47, %48, %cst_22 {dimension_numbers = #tpu.dot_dimension_numbers<[1], [0], [0], [1], [0, 0, 1, 1], [], []>} : vector<16x128xbf16>, vector<128x32xbf16>, vector<16x32xf32> -> vector<16x32xf32>
    %c0_23 = arith.constant 0 : index
    %c0_24 = arith.constant 0 : index
    %50 = vector.load %arg5[%c0_23, %c0_24] : memref<1x32xf32, #tpu.memory_space<vmem>>, vector<1x32xf32>
    %51 = vector.broadcast %50 : vector<1x32xf32> to vector<16x32xf32>
    %52 = arith.addf %49, %51 : vector<16x32xf32>
    %53 = arith.addf %52, %0 : vector<16x32xf32>
    %cst_25 = arith.constant dense<0.000000e+00> : vector<16xf32>
    %54 = vector.multi_reduction <add>, %53, %cst_25 [1] : vector<16x32xf32> to vector<16xf32>
    %55 = vector.shape_cast %54 : vector<16xf32> to vector<16x1xf32>
    %cst_26 = arith.constant 3.200000e+01 : f32
    %56 = vector.broadcast %cst_26 : f32 to vector<16x1xf32>
    %57 = arith.divf %55, %56 : vector<16x1xf32>
    %58 = vector.broadcast %57 : vector<16x1xf32> to vector<16x32xf32>
    %59 = arith.subf %53, %58 : vector<16x32xf32>
    %60 = arith.mulf %59, %59 : vector<16x32xf32>
    %cst_27 = arith.constant dense<0.000000e+00> : vector<16xf32>
    %61 = vector.multi_reduction <add>, %60, %cst_27 [1] : vector<16x32xf32> to vector<16xf32>
    %62 = vector.shape_cast %61 : vector<16xf32> to vector<16x1xf32>
    %cst_28 = arith.constant 3.200000e+01 : f32
    %63 = vector.broadcast %cst_28 : f32 to vector<16x1xf32>
    %64 = arith.divf %62, %63 : vector<16x1xf32>
    %c0_29 = arith.constant 0 : index
    %c0_30 = arith.constant 0 : index
    %65 = vector.load %arg6[%c0_29, %c0_30] : memref<1x32xf32, #tpu.memory_space<vmem>>, vector<1x32xf32>
    %cst_31 = arith.constant 9.99999996E-13 : f32
    %66 = vector.broadcast %cst_31 : f32 to vector<16x1xf32>
    %67 = arith.addf %64, %66 : vector<16x1xf32>
    %68 = math.rsqrt %67 : vector<16x1xf32>
    %69 = vector.broadcast %68 : vector<16x1xf32> to vector<16x32xf32>
    %70 = arith.mulf %59, %69 : vector<16x32xf32>
    %71 = vector.broadcast %65 : vector<1x32xf32> to vector<16x32xf32>
    %72 = arith.mulf %71, %70 : vector<16x32xf32>
    %c0_32 = arith.constant 0 : index
    %c0_33 = arith.constant 0 : index
    %73 = vector.load %arg7[%c0_32, %c0_33] : memref<1x32xf32, #tpu.memory_space<vmem>>, vector<1x32xf32>
    %74 = vector.broadcast %73 : vector<1x32xf32> to vector<16x32xf32>
    %75 = arith.addf %72, %74 : vector<16x32xf32>
    %c0_34 = arith.constant 0 : index
    %c0_35 = arith.constant 0 : index
    %76 = vector.load %arg8[%c0_34, %c0_35] : memref<16x32xf32, #tpu.memory_space<vmem>>, vector<16x32xf32>
    tpu.vector_store %arg8[%c0_34, %c0_35], %75 {strides = array<i32>} : memref<16x32xf32, #tpu.memory_space<vmem>>, vector<16x32xf32>,
    return
  }
  func.func @transform_0(%arg0: i32) -> (i32, i32) {
    %c0_i32 = arith.constant 0 : i32
    %c0_i32_0 = arith.constant 0 : i32
    return %arg0, %c0_i32 : i32, i32
  }
  func.func @transform_1(%arg0: i32) -> (i32, i32) {
    %c0_i32 = arith.constant 0 : i32
    %c0_i32_0 = arith.constant 0 : i32
    %c0_i32_1 = arith.constant 0 : i32
    return %c0_i32, %c0_i32_0 : i32, i32
  }
  func.func @transform_2(%arg0: i32) -> (i32, i32) {
    %c0_i32 = arith.constant 0 : i32
    %c0_i32_0 = arith.constant 0 : i32
    %c0_i32_1 = arith.constant 0 : i32
    return %c0_i32, %c0_i32_0 : i32, i32
  }
  func.func @transform_3(%arg0: i32) -> (i32, i32) {
    %c0_i32 = arith.constant 0 : i32
    %c0_i32_0 = arith.constant 0 : i32
    %c0_i32_1 = arith.constant 0 : i32
    return %c0_i32, %c0_i32_0 : i32, i32
  }
  func.func @transform_4(%arg0: i32) -> (i32, i32) {
    %c0_i32 = arith.constant 0 : i32
    %c0_i32_0 = arith.constant 0 : i32
    %c0_i32_1 = arith.constant 0 : i32
    return %c0_i32, %c0_i32_0 : i32, i32
  }
  func.func @transform_5(%arg0: i32) -> (i32, i32) {
    %c0_i32 = arith.constant 0 : i32
    %c0_i32_0 = arith.constant 0 : i32
    %c0_i32_1 = arith.constant 0 : i32
    return %c0_i32, %c0_i32_0 : i32, i32
  }
  func.func @transform_6(%arg0: i32) -> (i32, i32) {
    %c0_i32 = arith.constant 0 : i32
    %c0_i32_0 = arith.constant 0 : i32
    %c0_i32_1 = arith.constant 0 : i32
    return %c0_i32, %c0_i32_0 : i32, i32
  }
  func.func @transform_7(%arg0: i32) -> (i32, i32) {
    %c0_i32 = arith.constant 0 : i32
    %c0_i32_0 = arith.constant 0 : i32
    return %arg0, %c0_i32 : i32, i32
  }
}

module attributes {stable_mosaic.version = 11 : i64} {
  func.func @_ffn_ln_kernel(%arg0: i32, %arg1: memref<2x32xf32, #tpu.memory_space<vmem>>, %arg2: memref<32x128xbf16, #tpu.memory_space<vmem>>, %arg3: memref<1x128xf32, #tpu.memory_space<vmem>>, %arg4: memref<128x32xbf16, #tpu.memory_space<vmem>>, %arg5: memref<1x32xf32, #tpu.memory_space<vmem>>, %arg6: memref<1x32xf32, #tpu.memory_space<vmem>>, %arg7: memref<1x32xf32, #tpu.memory_space<vmem>>, %arg8: memref<2x32xf32, #tpu.memory_space<vmem>>) attributes {dimension_semantics = [#tpu.dimension_semantics<parallel>], iteration_bounds = array<i64: 1>, scalar_prefetch = 0 : i64, scratch_operands = 0 : i64, tpu.core_type = #tpu.core_type<tc>, window_params = [{transform_indices = @transform_0, window_bounds = array<i64: 2, 32>}, {pipeline_mode = #tpu.pipeline_mode<synchronous>, transform_indices = @transform_1, window_bounds = array<i64: 32, 128>}, {pipeline_mode = #tpu.pipeline_mode<synchronous>, transform_indices = @transform_2, window_bounds = array<i64: 1, 128>}, {pipeline_mode = #tpu.pipeline_mode<synchronous>, transform_indices = @transform_3, window_bounds = array<i64: 128, 32>}, {pipeline_mode = #tpu.pipeline_mode<synchronous>, transform_indices = @transform_4, window_bounds = array<i64: 1, 32>}, {pipeline_mode = #tpu.pipeline_mode<synchronous>, transform_indices = @transform_5, window_bounds = array<i64: 1, 32>}, {pipeline_mode = #tpu.pipeline_mode<synchronous>, transform_indices = @transform_6, window_bounds = array<i64: 1, 32>}, {transform_indices = @transform_7, window_bounds = array<i64: 2, 32>}]} {
    %c0 = arith.constant 0 : index
    %c0_0 = arith.constant 0 : index
    %0 = vector.load %arg1[%c0, %c0_0] : memref<2x32xf32, #tpu.memory_space<vmem>>, vector<2x32xf32>
    %1 = arith.truncf %0 : vector<2x32xf32> to vector<2x32xbf16>
    %c0_1 = arith.constant 0 : index
    %c0_2 = arith.constant 0 : index
    %2 = vector.load %arg2[%c0_1, %c0_2] : memref<32x128xbf16, #tpu.memory_space<vmem>>, vector<32x128xbf16>
    %cst = arith.constant dense<0.000000e+00> : vector<2x128xf32>
    %3 = tpu.matmul %1, %2, %cst {dimension_numbers = #tpu.dot_dimension_numbers<[1], [0], [0], [1], [0, 0, 1, 1], [], []>} : vector<2x32xbf16>, vector<32x128xbf16>, vector<2x128xf32> -> vector<2x128xf32>
    %c0_3 = arith.constant 0 : index
    %c0_4 = arith.constant 0 : index
    %4 = vector.load %arg3[%c0_3, %c0_4] : memref<1x128xf32, #tpu.memory_space<vmem>>, vector<1x128xf32>
    %5 = vector.broadcast %4 : vector<1x128xf32> to vector<2x128xf32>
    %6 = arith.addf %3, %5 : vector<2x128xf32>
    %cst_5 = arith.constant 0.707106769 : f32
    %7 = vector.broadcast %cst_5 : f32 to vector<2x128xf32>
    %8 = arith.mulf %6, %7 : vector<2x128xf32>
    %9 = math.absf %8 : vector<2x128xf32>
    %cst_6 = arith.constant 0.327591091 : f32
    %10 = vector.broadcast %cst_6 : f32 to vector<2x128xf32>
    %11 = arith.mulf %10, %9 : vector<2x128xf32>
    %cst_7 = arith.constant 1.000000e+00 : f32
    %12 = vector.broadcast %cst_7 : f32 to vector<2x128xf32>
    %13 = arith.addf %12, %11 : vector<2x128xf32>
    %cst_8 = arith.constant 1.000000e+00 : f32
    %14 = vector.broadcast %cst_8 : f32 to vector<2x128xf32>
    %15 = arith.divf %14, %13 : vector<2x128xf32>
    %cst_9 = arith.constant 1.06140542 : f32
    %16 = vector.broadcast %cst_9 : f32 to vector<2x128xf32>
    %17 = arith.mulf %16, %15 : vector<2x128xf32>
    %cst_10 = arith.constant 1.45315206 : f32
    %18 = vector.broadcast %cst_10 : f32 to vector<2x128xf32>
    %19 = arith.subf %17, %18 : vector<2x128xf32>
    %20 = arith.mulf %19, %15 : vector<2x128xf32>
    %cst_11 = arith.constant 1.42141378 : f32
    %21 = vector.broadcast %cst_11 : f32 to vector<2x128xf32>
    %22 = arith.addf %20, %21 : vector<2x128xf32>
    %23 = arith.mulf %22, %15 : vector<2x128xf32>
    %cst_12 = arith.constant 0.284496725 : f32
    %24 = vector.broadcast %cst_12 : f32 to vector<2x128xf32>
    %25 = arith.subf %23, %24 : vector<2x128xf32>
    %26 = arith.mulf %25, %15 : vector<2x128xf32>
    %cst_13 = arith.constant 0.254829586 : f32
    %27 = vector.broadcast %cst_13 : f32 to vector<2x128xf32>
    %28 = arith.addf %26, %27 : vector<2x128xf32>
    %29 = arith.mulf %28, %15 : vector<2x128xf32>
    %cst_14 = arith.constant 0.000000e+00 : f32
    %30 = vector.broadcast %cst_14 : f32 to vector<2x128xf32>
    %31 = arith.subf %30, %9 : vector<2x128xf32>
    %32 = arith.mulf %31, %9 : vector<2x128xf32>
    %33 = math.exp %32 : vector<2x128xf32>
    %34 = arith.mulf %29, %33 : vector<2x128xf32>
    %cst_15 = arith.constant 1.000000e+00 : f32
    %35 = vector.broadcast %cst_15 : f32 to vector<2x128xf32>
    %36 = arith.subf %35, %34 : vector<2x128xf32>
    %cst_16 = arith.constant 0.000000e+00 : f32
    %37 = vector.broadcast %cst_16 : f32 to vector<2x128xf32>
    %38 = arith.cmpf olt, %8, %37 : vector<2x128xf32>
    %cst_17 = arith.constant 0.000000e+00 : f32
    %39 = vector.broadcast %cst_17 : f32 to vector<2x128xf32>
    %40 = arith.subf %39, %36 : vector<2x128xf32>
    %41 = arith.select %38, %40, %36 : vector<2x128xi1>, vector<2x128xf32>
    %cst_18 = arith.constant 5.000000e-01 : f32
    %42 = vector.broadcast %cst_18 : f32 to vector<2x128xf32>
    %43 = arith.mulf %6, %42 : vector<2x128xf32>
    %cst_19 = arith.constant 1.000000e+00 : f32
    %44 = vector.broadcast %cst_19 : f32 to vector<2x128xf32>
    %45 = arith.addf %44, %41 : vector<2x128xf32>
    %46 = arith.mulf %43, %45 : vector<2x128xf32>
    %47 = arith.truncf %46 : vector<2x128xf32> to vector<2x128xbf16>
    %c0_20 = arith.constant 0 : index
    %c0_21 = arith.constant 0 : index
    %48 = vector.load %arg4[%c0_20, %c0_21] : memref<128x32xbf16, #tpu.memory_space<vmem>>, vector<128x32xbf16>
    %cst_22 = arith.constant dense<0.000000e+00> : vector<2x32xf32>
    %49 = tpu.matmul %47, %48, %cst_22 {dimension_numbers = #tpu.dot_dimension_numbers<[1], [0], [0], [1], [0, 0, 1, 1], [], []>} : vector<2x128xbf16>, vector<128x32xbf16>, vector<2x32xf32> -> vector<2x32xf32>
    %c0_23 = arith.constant 0 : index
    %c0_24 = arith.constant 0 : index
    %50 = vector.load %arg5[%c0_23, %c0_24] : memref<1x32xf32, #tpu.memory_space<vmem>>, vector<1x32xf32>
    %51 = vector.broadcast %50 : vector<1x32xf32> to vector<2x32xf32>
    %52 = arith.addf %49, %51 : vector<2x32xf32>
    %53 = arith.addf %52, %0 : vector<2x32xf32>
    %cst_25 = arith.constant dense<0.000000e+00> : vector<2xf32>
    %54 = vector.multi_reduction <add>, %53, %cst_25 [1] : vector<2x32xf32> to vector<2xf32>
    %55 = vector.shape_cast %54 : vector<2xf32> to vector<2x1xf32>
    %cst_26 = arith.constant 3.200000e+01 : f32
    %56 = vector.broadcast %cst_26 : f32 to vector<2x1xf32>
    %57 = arith.divf %55, %56 : vector<2x1xf32>
    %58 = vector.broadcast %57 : vector<2x1xf32> to vector<2x32xf32>
    %59 = arith.subf %53, %58 : vector<2x32xf32>
    %60 = arith.mulf %59, %59 : vector<2x32xf32>
    %cst_27 = arith.constant dense<0.000000e+00> : vector<2xf32>
    %61 = vector.multi_reduction <add>, %60, %cst_27 [1] : vector<2x32xf32> to vector<2xf32>
    %62 = vector.shape_cast %61 : vector<2xf32> to vector<2x1xf32>
    %cst_28 = arith.constant 3.200000e+01 : f32
    %63 = vector.broadcast %cst_28 : f32 to vector<2x1xf32>
    %64 = arith.divf %62, %63 : vector<2x1xf32>
    %c0_29 = arith.constant 0 : index
    %c0_30 = arith.constant 0 : index
    %65 = vector.load %arg6[%c0_29, %c0_30] : memref<1x32xf32, #tpu.memory_space<vmem>>, vector<1x32xf32>
    %cst_31 = arith.constant 9.99999996E-13 : f32
    %66 = vector.broadcast %cst_31 : f32 to vector<2x1xf32>
    %67 = arith.addf %64, %66 : vector<2x1xf32>
    %68 = math.rsqrt %67 : vector<2x1xf32>
    %69 = vector.broadcast %68 : vector<2x1xf32> to vector<2x32xf32>
    %70 = arith.mulf %59, %69 : vector<2x32xf32>
    %71 = vector.broadcast %65 : vector<1x32xf32> to vector<2x32xf32>
    %72 = arith.mulf %71, %70 : vector<2x32xf32>
    %c0_32 = arith.constant 0 : index
    %c0_33 = arith.constant 0 : index
    %73 = vector.load %arg7[%c0_32, %c0_33] : memref<1x32xf32, #tpu.memory_space<vmem>>, vector<1x32xf32>
    %74 = vector.broadcast %73 : vector<1x32xf32> to vector<2x32xf32>
    %75 = arith.addf %72, %74 : vector<2x32xf32>
    %c0_34 = arith.constant 0 : index
    %c0_35 = arith.constant 0 : index
    %76 = vector.load %arg8[%c0_34, %c0_35] : memref<2x32xf32, #tpu.memory_space<vmem>>, vector<2x32xf32>
    tpu.vector_store %arg8[%c0_34, %c0_35], %75 {strides = array<i32>} : memref<2x32xf32, #tpu.memory_space<vmem>>, vector<2x32xf32>,
    return
  }
  func.func @transform_0(%arg0: i32) -> (i32, i32) {
    %c0_i32 = arith.constant 0 : i32
    %c0_i32_0 = arith.constant 0 : i32
    return %arg0, %c0_i32 : i32, i32
  }
  func.func @transform_1(%arg0: i32) -> (i32, i32) {
    %c0_i32 = arith.constant 0 : i32
    %c0_i32_0 = arith.constant 0 : i32
    %c0_i32_1 = arith.constant 0 : i32
    return %c0_i32, %c0_i32_0 : i32, i32
  }
  func.func @transform_2(%arg0: i32) -> (i32, i32) {
    %c0_i32 = arith.constant 0 : i32
    %c0_i32_0 = arith.constant 0 : i32
    %c0_i32_1 = arith.constant 0 : i32
    return %c0_i32, %c0_i32_0 : i32, i32
  }
  func.func @transform_3(%arg0: i32) -> (i32, i32) {
    %c0_i32 = arith.constant 0 : i32
    %c0_i32_0 = arith.constant 0 : i32
    %c0_i32_1 = arith.constant 0 : i32
    return %c0_i32, %c0_i32_0 : i32, i32
  }
  func.func @transform_4(%arg0: i32) -> (i32, i32) {
    %c0_i32 = arith.constant 0 : i32
    %c0_i32_0 = arith.constant 0 : i32
    %c0_i32_1 = arith.constant 0 : i32
    return %c0_i32, %c0_i32_0 : i32, i32
  }
  func.func @transform_5(%arg0: i32) -> (i32, i32) {
    %c0_i32 = arith.constant 0 : i32
    %c0_i32_0 = arith.constant 0 : i32
    %c0_i32_1 = arith.constant 0 : i32
    return %c0_i32, %c0_i32_0 : i32, i32
  }
  func.func @transform_6(%arg0: i32) -> (i32, i32) {
    %c0_i32 = arith.constant 0 : i32
    %c0_i32_0 = arith.constant 0 : i32
    %c0_i32_1 = arith.constant 0 : i32
    return %c0_i32, %c0_i32_0 : i32, i32
  }
  func.func @transform_7(%arg0: i32) -> (i32, i32) {
    %c0_i32 = arith.constant 0 : i32
    %c0_i32_0 = arith.constant 0 : i32
    return %arg0, %c0_i32 : i32, i32
  }
}

</mosaic_0001>

<llo_original>
// kernel: dpp_intermediate.3
$region0: #{dpp_intermediate.3}
  #allocation0 [shape = 'u32[]', space=smem, size = 0x4, offset = 0x4, fixed_abs, tag = 'smem constant byte address 0x4 - core index']
  #allocation1 [shape = 'u32[72,128]{1,0:T(1,128)}', space=vmem, size = 0x9000, scoped, tag = 'internal scratch']
  %s0 = inlined_call_operand.vmem [shape: f32[2,32], index: 0, kind: input, shape index: {}]
  %s1 = inlined_call_operand.vmem [shape: bf16[32,128], index: 1, kind: input, shape index: {}]
  %s2 = inlined_call_operand.vmem [shape: f32[1,128], index: 2, kind: input, shape index: {}]
  %s3 = inlined_call_operand.vmem [shape: bf16[128,32], index: 3, kind: input, shape index: {}]
  %s4 = inlined_call_operand.vmem [shape: f32[1,32], index: 4, kind: input, shape index: {}]
  %s5 = inlined_call_operand.vmem [shape: f32[1,32], index: 5, kind: input, shape index: {}]
  %s6 = inlined_call_operand.vmem [shape: f32[1,32], index: 6, kind: input, shape index: {}]
  %s7 = inlined_call_operand.hbm [shape: f32[2,32], index: 7, kind: output, shape index: {}]
  %s8 = sld [smem:[#allocation0]]
  $region38: #{dpp_intermediate.3} parent=0
    _
  %s10 = ssub.s32 1, %s8
  %s11 = scalar_select 0, %s10, %s8
  $region1: #{dpp_intermediate.3} parent=0
    #allocation2 [shape = 'u8[1024]{0}', space=vmem, size = 0x400, scoped, tag = 'output window, operand 0, single buffered']
    #allocation3 [shape = 's32[1]{0}', space=sflag, size = 0x4, scoped, tag = 'scoped memory for dpp_intermediate.3']
    %12 = vsyncpa [#allocation3], 0
    // Predicated region
    $region2: #{dpp_intermediate.3} parent=1 // pred_check
      _
    $region3: #{dpp_intermediate.3} parent=1 // pred_check_branch
      %14 = sbr.rel (0) target = $region5
    $region4: #{dpp_intermediate.3} parent=1 // pred_region
      _
    $region5: #{dpp_intermediate.3} parent=1 // pred_fallthru
      _
    // Predicated region
    $region6: #{dpp_intermediate.3} parent=1 // pred_check
      _
    $region7: #{dpp_intermediate.3} parent=1 // pred_check_branch
      %16 = sbr.rel (0) target = $region9
    $region8: #{dpp_intermediate.3} parent=1 // pred_region
      _
    $region9: #{dpp_intermediate.3} parent=1 // pred_fallthru
      _
    // Predicated region
    $region10: #{dpp_intermediate.3} parent=1 // pred_check
      _
    $region11: #{dpp_intermediate.3} parent=1 // pred_check_branch
      %18 = sbr.rel (0) target = $region13
    $region12: #{dpp_intermediate.3} parent=1 // pred_region
      _
    $region13: #{dpp_intermediate.3} parent=1 // pred_fallthru
      _
    // Predicated region
    $region14: #{dpp_intermediate.3} parent=1 // pred_check
      _
    $region15: #{dpp_intermediate.3} parent=1 // pred_check_branch
      %20 = sbr.rel (0) target = $region17
    $region16: #{dpp_intermediate.3} parent=1 // pred_region
      _
    $region17: #{dpp_intermediate.3} parent=1 // pred_fallthru
      _
    // Predicated region
    $region18: #{dpp_intermediate.3} parent=1 // pred_check
      _
    $region19: #{dpp_intermediate.3} parent=1 // pred_check_branch
      %22 = sbr.rel (0) target = $region21
    $region20: #{dpp_intermediate.3} parent=1 // pred_region
      _
    $region21: #{dpp_intermediate.3} parent=1 // pred_fallthru
      _
    // Predicated region
    $region22: #{dpp_intermediate.3} parent=1 // pred_check
      _
    $region23: #{dpp_intermediate.3} parent=1 // pred_check_branch
      %24 = sbr.rel (0) target = $region25
    $region24: #{dpp_intermediate.3} parent=1 // pred_region
      _
    $region25: #{dpp_intermediate.3} parent=1 // pred_fallthru
      _
    // Predicated region
    $region26: #{dpp_intermediate.3} parent=1 // pred_check
      _
    $region27: #{dpp_intermediate.3} parent=1 // pred_check_branch
      %26 = sbr.rel (0) target = $region29
    $region28: #{dpp_intermediate.3} parent=1 // pred_region
      _
    $region29: #{dpp_intermediate.3} parent=1 // pred_fallthru
      _
    %v28 = vld [vmem:[%s0] sm:$0x3]
    %v29 = vpack.c.bf16 %v28, %v28
    %v30 = vld [vmem:[%s1] sm:$0xf]
    %v31 = vld [vmem:[%s1 + $0x4] sm:$0xf]
    %v32 = vld [vmem:[%s1 + $0x8] sm:$0xf]
    %v33 = vld [vmem:[%s1 + $0xc] sm:$0xf]
    %v34 = vld [vmem:[%s2] sm:$0x1]
    %v36 = vperm.slane %v34, 0
    %v42 = vunpack.c.l.b16 %v30
    %v43 = vunpack.c.l.b16 %v31
    %v44 = vunpack.c.l.b16 %v32
    %v45 = vunpack.c.l.b16 %v33
    %v46 = vpack.c.b16 %v43, %v42
    %v47 = vpack.c.b16 %v45, %v44
    %vm50 = vcmask 261120
    %v52 = vsel %vm50, %v29, 0
    %54 = vmatpush.bf16.msra.mxu0 0
    %55 = vmatpush.bf16.msra.mxu0 0
    %56 = vmatpush.bf16.msra.mxu0 0
    %57 = vmatpush.bf16.msra.mxu0 0
    %58 = vmatpush.bf16.msra.mxu0 0
    %59 = vmatpush.bf16.msra.mxu0 0
    %60 = vmatpush.bf16.msra.mxu0 %v47
    %61 = vmatpush.bf16.msra.mxu0 %v46
    %62 = vmatmul.bf16.gmra.mxu0 %v52
    %v63 = vpop.f32.mrf.mxu0
    %v64 = vadd.f32 %v36, %v63
    %v65 = vpop.f32.mrf.mxu0
    %66 = vdwg.mxu0
    %v67 = vmul.f32 %v64, 0.70710677
    %v68 = vand.u32 2147483647, %v67
    %v69 = vmul.f32 %v68, 0.3275911
    %v70 = vadd.f32 %v69, 1.0
    %v71 = vrcp.pop %v70
    %v72 = vmul.f32 %v70, %v71
    %v73 = vsub.f32 1.0, %v72
    %v74 = vmul.f32 %v71, %v73
    %v75 = vadd.f32 %v71, %v74
    %vm76 = vweird.f32 %v70
    %vm77 = vweird.f32 %v71
    %vm78 = vmor %vm76, %vm77
    %v79 = vsel %vm78, %v71, %v75
    %v80 = vand.u32 2147483647, %v70
    %vm81 = vcmp.eq.f32.partialorder %v80, 8.507059e+37
    %v82 = vand.u32 %v70, 2147483648
    %v83 = vor.u32 1.1754944e-38, %v82
    %v84 = vsel %vm81, %v83, %v79
    %v85 = vmul.f32 1.0, %v84
    %v86 = vmul.f32 %v85, 1.0614054
    %v87 = vsub.f32 %v86, 1.4531521
    %v88 = vmul.f32 %v87, %v85
    %v89 = vadd.f32 %v88, 1.4214138
    %v90 = vmul.f32 %v89, %v85
    %v91 = vsub.f32 %v90, 0.28449672
    %v92 = vmul.f32 %v91, %v85
    %v93 = vadd.f32 %v92, 0.2548296
    %v94 = vmul.f32 %v93, %v85
    %v95 = vsub.f32 0.0, %v68
    %v96 = vmul.f32 %v95, %v68
    %v97 = vmul.f32 %v96, 1.442695
    %v98 = vpow.pop %v97
    %v99 = vmul.f32 %v94, %v98
    %v100 = vsub.f32 1.0, %v99
    %vm101 = vcmp.lt.f32.partialorder %v67, 0.0
    %v102 = vsub.f32 0.0, %v100
    %v103 = vsel %vm101, %v102, %v100
    %v104 = vmul.f32 %v64, 0.5
    %v105 = vadd.f32 %v103, 1.0
    %v106 = vmul.f32 %v104, %v105
    %v107 = vpack.c.bf16 %v106, %v106
    %v108 = vld [vmem:[%s3] sm:$0xf]
    %v109 = vld [vmem:[%s3 + $0x4] sm:$0xf]
    %v110 = vld [vmem:[%s3 + $0x8] sm:$0xf]
    %v111 = vld [vmem:[%s3 + $0xc] sm:$0xf]
    %v112 = vld [vmem:[%s3 + $0x10] sm:$0xf]
    %v113 = vld [vmem:[%s3 + $0x14] sm:$0xf]
    %v114 = vld [vmem:[%s3 + $0x18] sm:$0xf]
    %v115 = vld [vmem:[%s3 + $0x1c] sm:$0xf]
    %v116 = vld [vmem:[%s3 + $0x20] sm:$0xf]
    %v117 = vld [vmem:[%s3 + $0x24] sm:$0xf]
    %v118 = vld [vmem:[%s3 + $0x28] sm:$0xf]
    %v119 = vld [vmem:[%s3 + $0x2c] sm:$0xf]
    %v120 = vld [vmem:[%s3 + $0x30] sm:$0xf]
    %v121 = vld [vmem:[%s3 + $0x34] sm:$0xf]
    %v122 = vld [vmem:[%s3 + $0x38] sm:$0xf]
    %v123 = vld [vmem:[%s3 + $0x3c] sm:$0xf]
    %v124 = vld [vmem:[%s4] sm:$0x1]
    %v126 = vperm.slane %v124, 0
    %v144 = vunpack.c.l.b16 %v108
    %v145 = vunpack.c.l.b16 %v109
    %v146 = vunpack.c.l.b16 %v110
    %v147 = vunpack.c.l.b16 %v111
    %v148 = vunpack.c.l.b16 %v112
    %v149 = vunpack.c.l.b16 %v113
    %v150 = vunpack.c.l.b16 %v114
    %v151 = vunpack.c.l.b16 %v115
    %v152 = vunpack.c.l.b16 %v116
    %v153 = vunpack.c.l.b16 %v117
    %v154 = vunpack.c.l.b16 %v118
    %v155 = vunpack.c.l.b16 %v119
    %v156 = vunpack.c.l.b16 %v120
    %v157 = vunpack.c.l.b16 %v121
    %v158 = vunpack.c.l.b16 %v122
    %v159 = vunpack.c.l.b16 %v123
    %v160 = vpack.c.b16 %v145, %v144
    %v161 = vpack.c.b16 %v147, %v146
    %v162 = vpack.c.b16 %v149, %v148
    %v163 = vpack.c.b16 %v151, %v150
    %v164 = vpack.c.b16 %v153, %v152
    %v165 = vpack.c.b16 %v155, %v154
    %v166 = vpack.c.b16 %v157, %v156
    %v167 = vpack.c.b16 %v159, %v158
    %176 = vmatpush.bf16.msra.mxu0 %v167
    %177 = vmatpush.bf16.msra.mxu0 %v166
    %178 = vmatpush.bf16.msra.mxu0 %v165
    %179 = vmatpush.bf16.msra.mxu0 %v164
    %180 = vmatpush.bf16.msra.mxu0 %v163
    %181 = vmatpush.bf16.msra.mxu0 %v162
    %182 = vmatpush.bf16.msra.mxu0 %v161
    %183 = vmatpush.bf16.msra.mxu0 %v160
    %184 = vmatmul.bf16.gmra.mxu0 %v107
    %v185 = vpop.f32.mrf.mxu0
    %v186 = vadd.f32 %v126, %v185
    %v187 = vpop.f32.mrf.mxu0
    %188 = vdwg.mxu0
    %v189 = vadd.f32 %v186, %v28
    %vm190 = vcmask 254976
    %v191 = vsel %vm190, %v189, 0.0
    %192 = vadd.xlane.f32.xlu0 %v191
    %v193 = vpop.xlane.xlu0 %192
    %v194 = vrcp.pop 32.0
    %v195 = vmul.f32 32.0, %v194
    %v196 = vsub.f32 1.0, %v195
    %v197 = vmul.f32 %v194, %v196
    %v198 = vadd.f32 %v194, %v197
    %vm199 = vweird.f32 %v194
    %v200 = vsel %vm199, %v194, %v198
    %v201 = vmul.f32 %v193, %v200
    %v202 = vsub.f32 %v189, %v201
    %v203 = vmul.f32 %v202, %v202
    %v204 = vsel %vm190, %v203, 0.0
    %205 = vadd.xlane.f32.xlu0 %v204
    %v206 = vpop.xlane.xlu0 %205
    %v207 = vmul.f32 %v206, %v200
    %v208 = vld [vmem:[%s5] sm:$0x1]
    %v209 = vadd.f32 %v207, 1e-12
    %v210 = vrsqrt.pop %v209
    %v211 = vmul.f32 %v210, %v209
    %v212 = vmul.f32 %v211, %v210
    %v213 = vmul.f32 0.5, %v212
    %v214 = vsub.f32 1.5, %v213
    %v215 = vmul.f32 %v210, %v214
    %vm216 = vweird.f32 %v209
    %vm217 = vweird.f32 %v210
    %vm218 = vmor %vm216, %vm217
    %v219 = vsel %vm218, %v210, %v215
    %v220 = vmul.f32 %v202, %v219
    %v222 = vperm.slane %v208, 0
    %v224 = vmul.f32 %v222, %v220
    %v225 = vld [vmem:[%s6] sm:$0x1]
    %v227 = vperm.slane %v225, 0
    %v229 = vadd.f32 %v224, %v227
    %230 = vst.msk [vmem:[#allocation2] sm:$0x3] %vm190, %v229
    // Predicated region
    $region30: #{dpp_intermediate.3} parent=1 // pred_check
      _
    $region31: #{dpp_intermediate.3} parent=1 // pred_check_branch
      %232 = sbr.rel (0) target = $region33
    $region32: #{dpp_intermediate.3} parent=1 // pred_region
      %234 = vsyncadd [#allocation3], 0
      %s236 = sshll.u32 [#allocation2], 4
      %s237 = int_to_ptr.vmem [resolvable:$true] %s236
      %s238 = sshll.u32 %s7, 4
      %s239 = int_to_ptr.hbm [resolvable:$true] %s238
      %241 = dma.vmem_to_hbm [thread:$0]  %s237, 32, %s239, [#allocation3]
    $region33: #{dpp_intermediate.3} parent=1 // pred_fallthru
      _
    // Predicated region
    $region34: #{dpp_intermediate.3} parent=1 // pred_check
      _
    $region35: #{dpp_intermediate.3} parent=1 // pred_check_branch
      %243 = sbr.rel (0) target = $region37
    $region36: #{dpp_intermediate.3} parent=1 // pred_region
      %245 = dma.done [#allocation3], 32
    $region37: #{dpp_intermediate.3} parent=1 // pred_fallthru
      _
    %246 = vsyncpa [#allocation3], 1

// kernel: dpp_intermediate.2
$region0: #{dpp_intermediate.2}
  #allocation0 [shape = 'u32[]', space=smem, size = 0x4, offset = 0x4, fixed_abs, tag = 'smem constant byte address 0x4 - core index']
  #allocation1 [shape = 'u32[72,128]{1,0:T(1,128)}', space=vmem, size = 0x9000, scoped, tag = 'internal scratch']
  %s0 = inlined_call_operand.vmem [shape: f32[16,32], index: 0, kind: input, shape index: {}]
  %s1 = inlined_call_operand.vmem [shape: bf16[32,128], index: 1, kind: input, shape index: {}]
  %s2 = inlined_call_operand.vmem [shape: f32[1,128], index: 2, kind: input, shape index: {}]
  %s3 = inlined_call_operand.vmem [shape: bf16[128,32], index: 3, kind: input, shape index: {}]
  %s4 = inlined_call_operand.vmem [shape: f32[1,32], index: 4, kind: input, shape index: {}]
  %s5 = inlined_call_operand.vmem [shape: f32[1,32], index: 5, kind: input, shape index: {}]
  %s6 = inlined_call_operand.vmem [shape: f32[1,32], index: 6, kind: input, shape index: {}]
  %s7 = inlined_call_operand.hbm [shape: f32[16,32], index: 7, kind: output, shape index: {}]
  %s8 = sld [smem:[#allocation0]]
  $region38: #{dpp_intermediate.2} parent=0
    _
  %s10 = ssub.s32 1, %s8
  %s11 = scalar_select 0, %s10, %s8
  $region1: #{dpp_intermediate.2} parent=0
    #allocation2 [shape = 'u8[8192]{0}', space=vmem, size = 0x2000, scoped, tag = 'output window, operand 0, single buffered']
    #allocation3 [shape = 's32[1]{0}', space=sflag, size = 0x4, scoped, tag = 'scoped memory for dpp_intermediate.2']
    %12 = vsyncpa [#allocation3], 0
    // Predicated region
    $region2: #{dpp_intermediate.2} parent=1 // pred_check
      _
    $region3: #{dpp_intermediate.2} parent=1 // pred_check_branch
      %14 = sbr.rel (0) target = $region5
    $region4: #{dpp_intermediate.2} parent=1 // pred_region
      _
    $region5: #{dpp_intermediate.2} parent=1 // pred_fallthru
      _
    // Predicated region
    $region6: #{dpp_intermediate.2} parent=1 // pred_check
      _
    $region7: #{dpp_intermediate.2} parent=1 // pred_check_branch
      %16 = sbr.rel (0) target = $region9
    $region8: #{dpp_intermediate.2} parent=1 // pred_region
      _
    $region9: #{dpp_intermediate.2} parent=1 // pred_fallthru
      _
    // Predicated region
    $region10: #{dpp_intermediate.2} parent=1 // pred_check
      _
    $region11: #{dpp_intermediate.2} parent=1 // pred_check_branch
      %18 = sbr.rel (0) target = $region13
    $region12: #{dpp_intermediate.2} parent=1 // pred_region
      _
    $region13: #{dpp_intermediate.2} parent=1 // pred_fallthru
      _
    // Predicated region
    $region14: #{dpp_intermediate.2} parent=1 // pred_check
      _
    $region15: #{dpp_intermediate.2} parent=1 // pred_check_branch
      %20 = sbr.rel (0) target = $region17
    $region16: #{dpp_intermediate.2} parent=1 // pred_region
      _
    $region17: #{dpp_intermediate.2} parent=1 // pred_fallthru
      _
    // Predicated region
    $region18: #{dpp_intermediate.2} parent=1 // pred_check
      _
    $region19: #{dpp_intermediate.2} parent=1 // pred_check_branch
      %22 = sbr.rel (0) target = $region21
    $region20: #{dpp_intermediate.2} parent=1 // pred_region
      _
    $region21: #{dpp_intermediate.2} parent=1 // pred_fallthru
      _
    // Predicated region
    $region22: #{dpp_intermediate.2} parent=1 // pred_check
      _
    $region23: #{dpp_intermediate.2} parent=1 // pred_check_branch
      %24 = sbr.rel (0) target = $region25
    $region24: #{dpp_intermediate.2} parent=1 // pred_region
      _
    $region25: #{dpp_intermediate.2} parent=1 // pred_fallthru
      _
    // Predicated region
    $region26: #{dpp_intermediate.2} parent=1 // pred_check
      _
    $region27: #{dpp_intermediate.2} parent=1 // pred_check_branch
      %26 = sbr.rel (0) target = $region29
    $region28: #{dpp_intermediate.2} parent=1 // pred_region
      _
    $region29: #{dpp_intermediate.2} parent=1 // pred_fallthru
      _
    %v28 = vld [vmem:[%s0] sm:$0xff]
    %v29 = vld [vmem:[%s0 + $0x8] sm:$0xff]
    %v30 = vpack.c.bf16 %v29, %v28
    %v31 = vld [vmem:[%s1] sm:$0xf]
    %v32 = vld [vmem:[%s1 + $0x4] sm:$0xf]
    %v33 = vld [vmem:[%s1 + $0x8] sm:$0xf]
    %v34 = vld [vmem:[%s1 + $0xc] sm:$0xf]
    %v35 = vld [vmem:[%s2] sm:$0x1]
    %v37 = vperm.slane %v35, 0
    %v43 = vunpack.c.l.b16 %v31
    %v44 = vunpack.c.l.b16 %v32
    %v45 = vunpack.c.l.b16 %v33
    %v46 = vunpack.c.l.b16 %v34
    %v47 = vpack.c.b16 %v44, %v43
    %v48 = vpack.c.b16 %v46, %v45
    %vm51 = vcmask 261120
    %v53 = vsel %vm51, %v30, 0
    %55 = vmatpush.bf16.msra.mxu0 0
    %56 = vmatpush.bf16.msra.mxu0 0
    %57 = vmatpush.bf16.msra.mxu0 0
    %58 = vmatpush.bf16.msra.mxu0 0
    %59 = vmatpush.bf16.msra.mxu0 0
    %60 = vmatpush.bf16.msra.mxu0 0
    %61 = vmatpush.bf16.msra.mxu0 %v48
    %62 = vmatpush.bf16.msra.mxu0 %v47
    %63 = vmatmul.bf16.gmra.mxu0 %v53
    %v64 = vpop.f32.mrf.mxu0
    %v65 = vadd.f32 %v37, %v64
    %v66 = vpop.f32.mrf.mxu0
    %v67 = vadd.f32 %v37, %v66
    %68 = vdwg.mxu0
    %v69 = vmul.f32 %v65, 0.70710677
    %v70 = vmul.f32 %v67, 0.70710677
    %v71 = vand.u32 2147483647, %v69
    %v72 = vand.u32 2147483647, %v70
    %v73 = vmul.f32 %v71, 0.3275911
    %v74 = vmul.f32 %v72, 0.3275911
    %v75 = vadd.f32 %v73, 1.0
    %v76 = vadd.f32 %v74, 1.0
    %v77 = vrcp.pop %v75
    %v78 = vmul.f32 %v75, %v77
    %v79 = vsub.f32 1.0, %v78
    %v80 = vmul.f32 %v77, %v79
    %v81 = vadd.f32 %v77, %v80
    %vm82 = vweird.f32 %v75
    %vm83 = vweird.f32 %v77
    %vm84 = vmor %vm82, %vm83
    %v85 = vsel %vm84, %v77, %v81
    %v86 = vand.u32 2147483647, %v75
    %vm87 = vcmp.eq.f32.partialorder %v86, 8.507059e+37
    %v88 = vand.u32 %v75, 2147483648
    %v89 = vor.u32 1.1754944e-38, %v88
    %v90 = vsel %vm87, %v89, %v85
    %v91 = vmul.f32 1.0, %v90
    %v92 = vrcp.pop %v76
    %v93 = vmul.f32 %v76, %v92
    %v94 = vsub.f32 1.0, %v93
    %v95 = vmul.f32 %v92, %v94
    %v96 = vadd.f32 %v92, %v95
    %vm97 = vweird.f32 %v76
    %vm98 = vweird.f32 %v92
    %vm99 = vmor %vm97, %vm98
    %v100 = vsel %vm99, %v92, %v96
    %v101 = vand.u32 2147483647, %v76
    %vm102 = vcmp.eq.f32.partialorder %v101, 8.507059e+37
    %v103 = vand.u32 %v76, 2147483648
    %v104 = vor.u32 1.1754944e-38, %v103
    %v105 = vsel %vm102, %v104, %v100
    %v106 = vmul.f32 1.0, %v105
    %v107 = vmul.f32 %v91, 1.0614054
    %v108 = vmul.f32 %v106, 1.0614054
    %v109 = vsub.f32 %v107, 1.4531521
    %v110 = vsub.f32 %v108, 1.4531521
    %v111 = vmul.f32 %v109, %v91
    %v112 = vmul.f32 %v110, %v106
    %v113 = vadd.f32 %v111, 1.4214138
    %v114 = vadd.f32 %v112, 1.4214138
    %v115 = vmul.f32 %v113, %v91
    %v116 = vmul.f32 %v114, %v106
    %v117 = vsub.f32 %v115, 0.28449672
    %v118 = vsub.f32 %v116, 0.28449672
    %v119 = vmul.f32 %v117, %v91
    %v120 = vmul.f32 %v118, %v106
    %v121 = vadd.f32 %v119, 0.2548296
    %v122 = vadd.f32 %v120, 0.2548296
    %v123 = vmul.f32 %v121, %v91
    %v124 = vmul.f32 %v122, %v106
    %v125 = vsub.f32 0.0, %v71
    %v126 = vsub.f32 0.0, %v72
    %v127 = vmul.f32 %v125, %v71
    %v128 = vmul.f32 %v126, %v72
    %v129 = vmul.f32 %v127, 1.442695
    %v130 = vpow.pop %v129
    %v131 = vmul.f32 %v128, 1.442695
    %v132 = vpow.pop %v131
    %v133 = vmul.f32 %v123, %v130
    %v134 = vmul.f32 %v124, %v132
    %v135 = vsub.f32 1.0, %v133
    %v136 = vsub.f32 1.0, %v134
    %vm137 = vcmp.lt.f32.partialorder %v69, 0.0
    %vm138 = vcmp.lt.f32.partialorder %v70, 0.0
    %v139 = vsub.f32 0.0, %v135
    %v140 = vsub.f32 0.0, %v136
    %v141 = vsel %vm137, %v139, %v135
    %v142 = vsel %vm138, %v140, %v136
    %v143 = vmul.f32 %v65, 0.5
    %v144 = vmul.f32 %v67, 0.5
    %v145 = vadd.f32 %v141, 1.0
    %v146 = vadd.f32 %v142, 1.0
    %v147 = vmul.f32 %v143, %v145
    %v148 = vmul.f32 %v144, %v146
    %v149 = vpack.c.bf16 %v148, %v147
    %v150 = vld [vmem:[%s3] sm:$0xf]
    %v151 = vld [vmem:[%s3 + $0x4] sm:$0xf]
    %v152 = vld [vmem:[%s3 + $0x8] sm:$0xf]
    %v153 = vld [vmem:[%s3 + $0xc] sm:$0xf]
    %v154 = vld [vmem:[%s3 + $0x10] sm:$0xf]
    %v155 = vld [vmem:[%s3 + $0x14] sm:$0xf]
    %v156 = vld [vmem:[%s3 + $0x18] sm:$0xf]
    %v157 = vld [vmem:[%s3 + $0x1c] sm:$0xf]
    %v158 = vld [vmem:[%s3 + $0x20] sm:$0xf]
    %v159 = vld [vmem:[%s3 + $0x24] sm:$0xf]
    %v160 = vld [vmem:[%s3 + $0x28] sm:$0xf]
    %v161 = vld [vmem:[%s3 + $0x2c] sm:$0xf]
    %v162 = vld [vmem:[%s3 + $0x30] sm:$0xf]
    %v163 = vld [vmem:[%s3 + $0x34] sm:$0xf]
    %v164 = vld [vmem:[%s3 + $0x38] sm:$0xf]
    %v165 = vld [vmem:[%s3 + $0x3c] sm:$0xf]
    %v166 = vld [vmem:[%s4] sm:$0x1]
    %v168 = vperm.slane %v166, 0
    %v186 = vunpack.c.l.b16 %v150
    %v187 = vunpack.c.l.b16 %v151
    %v188 = vunpack.c.l.b16 %v152
    %v189 = vunpack.c.l.b16 %v153
    %v190 = vunpack.c.l.b16 %v154
    %v191 = vunpack.c.l.b16 %v155
    %v192 = vunpack.c.l.b16 %v156
    %v193 = vunpack.c.l.b16 %v157
    %v194 = vunpack.c.l.b16 %v158
    %v195 = vunpack.c.l.b16 %v159
    %v196 = vunpack.c.l.b16 %v160
    %v197 = vunpack.c.l.b16 %v161
    %v198 = vunpack.c.l.b16 %v162
    %v199 = vunpack.c.l.b16 %v163
    %v200 = vunpack.c.l.b16 %v164
    %v201 = vunpack.c.l.b16 %v165
    %v202 = vpack.c.b16 %v187, %v186
    %v203 = vpack.c.b16 %v189, %v188
    %v204 = vpack.c.b16 %v191, %v190
    %v205 = vpack.c.b16 %v193, %v192
    %v206 = vpack.c.b16 %v195, %v194
    %v207 = vpack.c.b16 %v197, %v196
    %v208 = vpack.c.b16 %v199, %v198
    %v209 = vpack.c.b16 %v201, %v200
    %218 = vmatpush.bf16.msra.mxu0 %v209
    %219 = vmatpush.bf16.msra.mxu0 %v208
    %220 = vmatpush.bf16.msra.mxu0 %v207
    %221 = vmatpush.bf16.msra.mxu0 %v206
    %222 = vmatpush.bf16.msra.mxu0 %v205
    %223 = vmatpush.bf16.msra.mxu0 %v204
    %224 = vmatpush.bf16.msra.mxu0 %v203
    %225 = vmatpush.bf16.msra.mxu0 %v202
    %226 = vmatmul.bf16.gmra.mxu0 %v149
    %v227 = vpop.f32.mrf.mxu0
    %v228 = vadd.f32 %v168, %v227
    %v229 = vpop.f32.mrf.mxu0
    %v230 = vadd.f32 %v168, %v229
    %231 = vdwg.mxu0
    %v232 = vadd.f32 %v228, %v28
    %v233 = vadd.f32 %v230, %v29
    %v234 = vsel %vm51, %v232, 0.0
    %235 = vadd.xlane.f32.xlu0 %v234
    %v236 = vpop.xlane.xlu0 %235
    %v237 = vsel %vm51, %v233, 0.0
    %238 = vadd.xlane.f32.xlu0 %v237
    %v239 = vpop.xlane.xlu0 %238
    %v240 = vrcp.pop 32.0
    %v241 = vmul.f32 32.0, %v240
    %v242 = vsub.f32 1.0, %v241
    %v243 = vmul.f32 %v240, %v242
    %v244 = vadd.f32 %v240, %v243
    %vm245 = vweird.f32 %v240
    %v246 = vsel %vm245, %v240, %v244
    %v247 = vmul.f32 %v236, %v246
    %v248 = vmul.f32 %v239, %v246
    %v249 = vsub.f32 %v232, %v247
    %v250 = vsub.f32 %v233, %v248
    %v251 = vmul.f32 %v249, %v249
    %v252 = vmul.f32 %v250, %v250
    %v253 = vsel %vm51, %v251, 0.0
    %254 = vadd.xlane.f32.xlu0 %v253
    %v255 = vpop.xlane.xlu0 %254
    %v256 = vsel %vm51, %v252, 0.0
    %257 = vadd.xlane.f32.xlu0 %v256
    %v258 = vpop.xlane.xlu0 %257
    %v259 = vmul.f32 %v255, %v246
    %v260 = vmul.f32 %v258, %v246
    %v261 = vld [vmem:[%s5] sm:$0x1]
    %v262 = vadd.f32 %v259, 1e-12
    %v263 = vadd.f32 %v260, 1e-12
    %v264 = vrsqrt.pop %v262
    %v265 = vmul.f32 %v264, %v262
    %v266 = vmul.f32 %v265, %v264
    %v267 = vmul.f32 0.5, %v266
    %v268 = vsub.f32 1.5, %v267
    %v269 = vmul.f32 %v264, %v268
    %vm270 = vweird.f32 %v262
    %vm271 = vweird.f32 %v264
    %vm272 = vmor %vm270, %vm271
    %v273 = vsel %vm272, %v264, %v269
    %v274 = vrsqrt.pop %v263
    %v275 = vmul.f32 %v274, %v263
    %v276 = vmul.f32 %v275, %v274
    %v277 = vmul.f32 0.5, %v276
    %v278 = vsub.f32 1.5, %v277
    %v279 = vmul.f32 %v274, %v278
    %vm280 = vweird.f32 %v263
    %vm281 = vweird.f32 %v274
    %vm282 = vmor %vm280, %vm281
    %v283 = vsel %vm282, %v274, %v279
    %v284 = vmul.f32 %v249, %v273
    %v285 = vmul.f32 %v250, %v283
    %v287 = vperm.slane %v261, 0
    %v289 = vmul.f32 %v287, %v284
    %v290 = vmul.f32 %v287, %v285
    %v291 = vld [vmem:[%s6] sm:$0x1]
    %v293 = vperm.slane %v291, 0
    %v295 = vadd.f32 %v289, %v293
    %v296 = vadd.f32 %v290, %v293
    %297 = vst.msk [vmem:[#allocation2] sm:$0xff] %vm51, %v295
    %298 = vst.msk [vmem:[#allocation2 + $0x8] sm:$0xff] %vm51, %v296
    // Predicated region
    $region30: #{dpp_intermediate.2} parent=1 // pred_check
      _
    $region31: #{dpp_intermediate.2} parent=1 // pred_check_branch
      %300 = sbr.rel (0) target = $region33
    $region32: #{dpp_intermediate.2} parent=1 // pred_region
      %302 = vsyncadd [#allocation3], 0
      %s303 = sshll.u32 [#allocation2], 4
      %s304 = int_to_ptr.vmem [resolvable:$true] %s303
      %s305 = sshll.u32 %s7, 4
      %s306 = int_to_ptr.hbm [resolvable:$true] %s305
      %311 = dma.vmem_to_hbm [thread:$0]  %s304, 256, %s306, [#allocation3], 128, 128, 8
    $region33: #{dpp_intermediate.2} parent=1 // pred_fallthru
      _
    // Predicated region
    $region34: #{dpp_intermediate.2} parent=1 // pred_check
      _
    $region35: #{dpp_intermediate.2} parent=1 // pred_check_branch
      %313 = sbr.rel (0) target = $region37
    $region36: #{dpp_intermediate.2} parent=1 // pred_region
      %315 = dma.done [#allocation3], 256
    $region37: #{dpp_intermediate.2} parent=1 // pred_fallthru
      _
    %316 = vsyncpa [#allocation3], 1

</llo_original>
